<compile_context>
chip_gen: v7x
topology: tpu7x:2x2x1
jax: 0.10.0
libtpu: 0.0.40
codegen_flags: <defaults>
</compile_context>

<pallas_src>
import functools

import jax
import jax.numpy as jnp
from jax.experimental import pallas as pl
from jax.experimental.pallas import tpu as pltpu

_EPS = 1e-5
_LANE = 128


def _round_up(n, m):
    return (n + m - 1) // m * m


def _net_kernel(x_ref, w1_ref, w2_ref, w3_ref, bn_ref, b3_ref, o_ref, *, d_out):
    x = x_ref[...]
    inv_b = 1.0 / x.shape[0]

    def bn_relu(h, gamma, beta):
        # Single-pass stats: var = E[h^2] - E[h]^2, then one fused scale+shift.
        mu = jnp.sum(h, axis=0, keepdims=True) * inv_b
        ex2 = jnp.sum(h * h, axis=0, keepdims=True) * inv_b
        var = ex2 - mu * mu
        scale = gamma * jax.lax.rsqrt(var + _EPS)
        shift = beta - mu * scale
        return jnp.maximum(h * scale + shift, 0.0)

    # fc1 (+BN cancels its bias) -> BN -> ReLU
    h = jnp.dot(x, w1_ref[...], preferred_element_type=jnp.float32)
    h = bn_relu(h, bn_ref[0:1, :], bn_ref[1:2, :])

    # fc2 (+BN cancels its bias) -> BN -> ReLU
    h = jnp.dot(h, w2_ref[...], preferred_element_type=jnp.float32)
    h = bn_relu(h, bn_ref[2:3, :], bn_ref[3:4, :])

    # fc3 -> log_softmax over the first d_out (real) classes.
    logits = jnp.dot(h, w3_ref[...], preferred_element_type=jnp.float32) + b3_ref[...]

    if logits.shape[1] != d_out:
        lane = jax.lax.broadcasted_iota(jnp.int32, logits.shape, 1)
        logits_m = jnp.where(lane < d_out, logits, -1e30)  # padded lanes ignored
    else:
        logits_m = logits

    m = jnp.max(logits_m, axis=1, keepdims=True)
    lse = m + jnp.log(jnp.sum(jnp.exp(logits_m - m), axis=1, keepdims=True))
    # Lane-dense store; padded output columns are garbage and sliced off outside.
    o_ref[...] = (logits - lse).astype(o_ref.dtype)


@jax.jit
def net_forward(x, params):
    """params use PyTorch Linear layout: w* is (fan_out, fan_in), b*/g*/be* are (fan_out,)."""
    B, d_in = x.shape
    d_hid = params["w1"].shape[0]
    d_out = params["w3"].shape[0]
    d_out_p = _round_up(d_out, _LANE)

    # Pre-transpose weights so the kernel does plain row-major x @ W_t.
    w1_t = params["w1"].T                                   # (d_in,  d_hid)
    w2_t = params["w2"].T                                   # (d_hid, d_hid)
    w3_t = jnp.zeros((d_hid, d_out_p), jnp.float32).at[:, :d_out].set(params["w3"].T)
    b3_p = jnp.zeros((1, d_out_p), jnp.float32).at[0, :d_out].set(params["b3"])
    # fc1/fc2 biases intentionally omitted (cancel under training-mode BN).
    bn = jnp.stack([params["g1"], params["be1"], params["g2"], params["be2"]], axis=0)

    args = (x, w1_t, w2_t, w3_t, bn, b3_p)
    vmem = pltpu.MemorySpace.VMEM

    flops = 2 * B * (d_in * d_hid + d_hid * d_hid + d_hid * d_out_p) + 12 * B * d_hid
    transcendentals = 2 * d_hid + B * (d_out_p + 1)
    bytes_accessed = sum(a.size * a.dtype.itemsize for a in args) + B * d_out_p * 4

    out_padded = pl.pallas_call(
        functools.partial(_net_kernel, d_out=d_out),
        out_shape=jax.ShapeDtypeStruct((B, d_out_p), jnp.float32),
        in_specs=[pl.BlockSpec(memory_space=vmem) for _ in args],
        out_specs=pl.BlockSpec(memory_space=vmem),
        cost_estimate=pl.CostEstimate(
            flops=flops,
            transcendentals=transcendentals,
            bytes_accessed=bytes_accessed,
        ),
    )(*args)
    return out_padded[:, :d_out]


def init_params(key, d_in, d_hid, d_out):
    """Deterministic synthetic parameters in PyTorch Linear/BatchNorm1d layout."""
    ks = jax.random.split(key, 6)

    def linear(kw, kb, fan_in, fan_out):
        bound = 1.0 / jnp.sqrt(fan_in)
        w = jax.random.uniform(kw, (fan_out, fan_in), jnp.float32, -bound, bound)
        b = jax.random.uniform(kb, (fan_out,), jnp.float32, -bound, bound)
        return w, b

    w1, b1 = linear(ks[0], ks[1], d_in, d_hid)
    w2, b2 = linear(ks[2], ks[3], d_hid, d_hid)
    w3, b3 = linear(ks[4], ks[5], d_hid, d_out)

    return dict(
        w1=w1, b1=b1, g1=jnp.ones((d_hid,), jnp.float32), be1=jnp.zeros((d_hid,), jnp.float32),
        w2=w2, b2=b2, g2=jnp.ones((d_hid,), jnp.float32), be2=jnp.zeros((d_hid,), jnp.float32),
        w3=w3, b3=b3,
    )


def _reference(x, p):
    """Pure-JAX reference with the full PyTorch semantics (biases included)."""
    def bn(h, g, be):
        mu = jnp.mean(h, axis=0, keepdims=True)
        var = jnp.mean((h - mu) ** 2, axis=0, keepdims=True)
        return (h - mu) * jax.lax.rsqrt(var + _EPS) * g + be

    h = jnp.maximum(bn(x @ p["w1"].T + p["b1"], p["g1"], p["be1"]), 0.0)
    h = jnp.maximum(bn(h @ p["w2"].T + p["b2"], p["g2"], p["be2"]), 0.0)
    logits = h @ p["w3"].T + p["b3"]
    return jax.nn.log_softmax(logits, axis=1)


if __name__ == "__main__":
    key = jax.random.PRNGKey(0)
    k_x, k_p = jax.random.split(key)

    B, d_in, d_hid, d_out = 8, 16, 32, 8
    x = jax.random.normal(k_x, (B, d_in), jnp.float32)
    params = init_params(k_p, d_in, d_hid, d_out)

    out = net_forward(x, params)
    out = jax.block_until_ready(out)

    ref = _reference(x, params)
    assert out.shape == (B, d_out)
    assert jnp.allclose(out, ref, atol=2e-5, rtol=2e-5), "mismatch vs reference"

    print("KERNEL_OK")
</pallas_src>

<mosaic_0001>
module attributes {stable_mosaic.version = 11 : i64} {
  func.func @_net_kernel(%arg0: memref<8x16xf32, #tpu.memory_space<vmem>>, %arg1: memref<16x32xf32, #tpu.memory_space<vmem>>, %arg2: memref<32x32xf32, #tpu.memory_space<vmem>>, %arg3: memref<32x128xf32, #tpu.memory_space<vmem>>, %arg4: memref<4x32xf32, #tpu.memory_space<vmem>>, %arg5: memref<1x128xf32, #tpu.memory_space<vmem>>, %arg6: memref<8x128xf32, #tpu.memory_space<vmem>>) attributes {dimension_semantics = [], scalar_prefetch = 0 : i64, scratch_operands = 0 : i64, tpu.core_type = #tpu.core_type<tc>} {
    %c0 = arith.constant 0 : index
    %c0_0 = arith.constant 0 : index
    %0 = vector.load %arg0[%c0, %c0_0] : memref<8x16xf32, #tpu.memory_space<vmem>>, vector<8x16xf32>
    %c0_1 = arith.constant 0 : index
    %c0_2 = arith.constant 0 : index
    %1 = vector.load %arg1[%c0_1, %c0_2] : memref<16x32xf32, #tpu.memory_space<vmem>>, vector<16x32xf32>
    %cst = arith.constant dense<0.000000e+00> : vector<8x32xf32>
    %2 = tpu.matmul %0, %1, %cst {dimension_numbers = #tpu.dot_dimension_numbers<[1], [0], [0], [1], [0, 0, 1, 1], [], []>} : vector<8x16xf32>, vector<16x32xf32>, vector<8x32xf32> -> vector<8x32xf32>
    %c0_3 = arith.constant 0 : index
    %c0_4 = arith.constant 0 : index
    %3 = vector.load %arg4[%c0_3, %c0_4] : memref<4x32xf32, #tpu.memory_space<vmem>>, vector<1x32xf32>
    %c1 = arith.constant 1 : index
    %c0_5 = arith.constant 0 : index
    %4 = vector.load %arg4[%c1, %c0_5] : memref<4x32xf32, #tpu.memory_space<vmem>>, vector<1x32xf32>
    %cst_6 = arith.constant dense<0.000000e+00> : vector<32xf32>
    %5 = vector.multi_reduction <add>, %2, %cst_6 [0] : vector<8x32xf32> to vector<32xf32>
    %6 = vector.shape_cast %5 : vector<32xf32> to vector<1x32xf32>
    %cst_7 = arith.constant 1.250000e-01 : f32
    %7 = vector.broadcast %cst_7 : f32 to vector<1x32xf32>
    %8 = arith.mulf %6, %7 : vector<1x32xf32>
    %9 = arith.mulf %2, %2 : vector<8x32xf32>
    %cst_8 = arith.constant dense<0.000000e+00> : vector<32xf32>
    %10 = vector.multi_reduction <add>, %9, %cst_8 [0] : vector<8x32xf32> to vector<32xf32>
    %11 = vector.shape_cast %10 : vector<32xf32> to vector<1x32xf32>
    %cst_9 = arith.constant 1.250000e-01 : f32
    %12 = vector.broadcast %cst_9 : f32 to vector<1x32xf32>
    %13 = arith.mulf %11, %12 : vector<1x32xf32>
    %14 = arith.mulf %8, %8 : vector<1x32xf32>
    %15 = arith.subf %13, %14 : vector<1x32xf32>
    %cst_10 = arith.constant 9.99999974E-6 : f32
    %16 = vector.broadcast %cst_10 : f32 to vector<1x32xf32>
    %17 = arith.addf %15, %16 : vector<1x32xf32>
    %18 = math.rsqrt %17 : vector<1x32xf32>
    %19 = arith.mulf %3, %18 : vector<1x32xf32>
    %20 = arith.mulf %8, %19 : vector<1x32xf32>
    %21 = arith.subf %4, %20 : vector<1x32xf32>
    %22 = vector.broadcast %19 : vector<1x32xf32> to vector<8x32xf32>
    %23 = arith.mulf %2, %22 : vector<8x32xf32>
    %24 = vector.broadcast %21 : vector<1x32xf32> to vector<8x32xf32>
    %25 = arith.addf %23, %24 : vector<8x32xf32>
    %cst_11 = arith.constant 0.000000e+00 : f32
    %26 = vector.broadcast %cst_11 : f32 to vector<8x32xf32>
    %27 = arith.maximumf %25, %26 : vector<8x32xf32>
    %c0_12 = arith.constant 0 : index
    %c0_13 = arith.constant 0 : index
    %28 = vector.load %arg2[%c0_12, %c0_13] : memref<32x32xf32, #tpu.memory_space<vmem>>, vector<32x32xf32>
    %cst_14 = arith.constant dense<0.000000e+00> : vector<8x32xf32>
    %29 = tpu.matmul %27, %28, %cst_14 {dimension_numbers = #tpu.dot_dimension_numbers<[1], [0], [0], [1], [0, 0, 1, 1], [], []>} : vector<8x32xf32>, vector<32x32xf32>, vector<8x32xf32> -> vector<8x32xf32>
    %c2 = arith.constant 2 : index
    %c0_15 = arith.constant 0 : index
    %30 = vector.load %arg4[%c2, %c0_15] : memref<4x32xf32, #tpu.memory_space<vmem>>, vector<1x32xf32>
    %c3 = arith.constant 3 : index
    %c0_16 = arith.constant 0 : index
    %31 = vector.load %arg4[%c3, %c0_16] : memref<4x32xf32, #tpu.memory_space<vmem>>, vector<1x32xf32>
    %cst_17 = arith.constant dense<0.000000e+00> : vector<32xf32>
    %32 = vector.multi_reduction <add>, %29, %cst_17 [0] : vector<8x32xf32> to vector<32xf32>
    %33 = vector.shape_cast %32 : vector<32xf32> to vector<1x32xf32>
    %cst_18 = arith.constant 1.250000e-01 : f32
    %34 = vector.broadcast %cst_18 : f32 to vector<1x32xf32>
    %35 = arith.mulf %33, %34 : vector<1x32xf32>
    %36 = arith.mulf %29, %29 : vector<8x32xf32>
    %cst_19 = arith.constant dense<0.000000e+00> : vector<32xf32>
    %37 = vector.multi_reduction <add>, %36, %cst_19 [0] : vector<8x32xf32> to vector<32xf32>
    %38 = vector.shape_cast %37 : vector<32xf32> to vector<1x32xf32>
    %cst_20 = arith.constant 1.250000e-01 : f32
    %39 = vector.broadcast %cst_20 : f32 to vector<1x32xf32>
    %40 = arith.mulf %38, %39 : vector<1x32xf32>
    %41 = arith.mulf %35, %35 : vector<1x32xf32>
    %42 = arith.subf %40, %41 : vector<1x32xf32>
    %cst_21 = arith.constant 9.99999974E-6 : f32
    %43 = vector.broadcast %cst_21 : f32 to vector<1x32xf32>
    %44 = arith.addf %42, %43 : vector<1x32xf32>
    %45 = math.rsqrt %44 : vector<1x32xf32>
    %46 = arith.mulf %30, %45 : vector<1x32xf32>
    %47 = arith.mulf %35, %46 : vector<1x32xf32>
    %48 = arith.subf %31, %47 : vector<1x32xf32>
    %49 = vector.broadcast %46 : vector<1x32xf32> to vector<8x32xf32>
    %50 = arith.mulf %29, %49 : vector<8x32xf32>
    %51 = vector.broadcast %48 : vector<1x32xf32> to vector<8x32xf32>
    %52 = arith.addf %50, %51 : vector<8x32xf32>
    %cst_22 = arith.constant 0.000000e+00 : f32
    %53 = vector.broadcast %cst_22 : f32 to vector<8x32xf32>
    %54 = arith.maximumf %52, %53 : vector<8x32xf32>
    %c0_23 = arith.constant 0 : index
    %c0_24 = arith.constant 0 : index
    %55 = vector.load %arg3[%c0_23, %c0_24] : memref<32x128xf32, #tpu.memory_space<vmem>>, vector<32x128xf32>
    %cst_25 = arith.constant dense<0.000000e+00> : vector<8x128xf32>
    %56 = tpu.matmul %54, %55, %cst_25 {dimension_numbers = #tpu.dot_dimension_numbers<[1], [0], [0], [1], [0, 0, 1, 1], [], []>} : vector<8x32xf32>, vector<32x128xf32>, vector<8x128xf32> -> vector<8x128xf32>
    %c0_26 = arith.constant 0 : index
    %c0_27 = arith.constant 0 : index
    %57 = vector.load %arg5[%c0_26, %c0_27] : memref<1x128xf32, #tpu.memory_space<vmem>>, vector<1x128xf32>
    %58 = vector.broadcast %57 : vector<1x128xf32> to vector<8x128xf32>
    %59 = arith.addf %56, %58 : vector<8x128xf32>
    %60 = tpu.iota {dimensions = array<i32: 1>} : vector<8x128xi32>
    %c8_i32 = arith.constant 8 : i32
    %61 = vector.broadcast %c8_i32 : i32 to vector<8x128xi32>
    %62 = arith.cmpi slt, %60, %61 : vector<8x128xi32>
    %cst_28 = arith.constant -1.000000e+30 : f32
    %63 = vector.broadcast %cst_28 : f32 to vector<8x128xf32>
    %64 = arith.select %62, %59, %63 : vector<8x128xi1>, vector<8x128xf32>
    %cst_29 = arith.constant dense<0xFF800000> : vector<8xf32>
    %65 = vector.multi_reduction <maximumf>, %64, %cst_29 [1] : vector<8x128xf32> to vector<8xf32>
    %66 = vector.shape_cast %65 : vector<8xf32> to vector<8x1xf32>
    %67 = vector.broadcast %66 : vector<8x1xf32> to vector<8x128xf32>
    %68 = arith.subf %64, %67 : vector<8x128xf32>
    %69 = math.exp %68 : vector<8x128xf32>
    %cst_30 = arith.constant dense<0.000000e+00> : vector<8xf32>
    %70 = vector.multi_reduction <add>, %69, %cst_30 [1] : vector<8x128xf32> to vector<8xf32>
    %71 = vector.shape_cast %70 : vector<8xf32> to vector<8x1xf32>
    %72 = math.log %71 : vector<8x1xf32>
    %73 = arith.addf %66, %72 : vector<8x1xf32>
    %74 = vector.broadcast %73 : vector<8x1xf32> to vector<8x128xf32>
    %75 = arith.subf %59, %74 : vector<8x128xf32>
    %c0_31 = arith.constant 0 : index
    %c0_32 = arith.constant 0 : index
    %76 = vector.load %arg6[%c0_31, %c0_32] : memref<8x128xf32, #tpu.memory_space<vmem>>, vector<8x128xf32>
    tpu.vector_store %arg6[%c0_31, %c0_32], %75 {strides = array<i32>} : memref<8x128xf32, #tpu.memory_space<vmem>>, vector<8x128xf32>,
    return
  }
}

</mosaic_0001>

<llo_original>
// kernel: net_forward.1
$region0: #{net_forward.1}
  #allocation0 [shape = 'u32[]', space=smem, size = 0x4, offset = 0x4, fixed_abs, tag = 'smem constant byte address 0x4 - core index']
  #allocation1 [shape = 'u32[144,128]{1,0:T(1,128)}', space=vmem, size = 0x12000, scoped, tag = 'internal scratch']
  %s0 = inlined_call_operand.vmem [shape: f32[8,16], index: 0, kind: input, shape index: {}]
  %s1 = inlined_call_operand.vmem [shape: f32[16,32], index: 1, kind: input, shape index: {}]
  %s2 = inlined_call_operand.vmem [shape: f32[32,32], index: 2, kind: input, shape index: {}]
  %s3 = inlined_call_operand.vmem [shape: f32[32,128], index: 3, kind: input, shape index: {}]
  %s4 = inlined_call_operand.vmem [shape: f32[4,32], index: 4, kind: input, shape index: {}]
  %s5 = inlined_call_operand.vmem [shape: f32[1,128], index: 5, kind: input, shape index: {}]
  %s6 = inlined_call_operand.hbm [shape: f32[8,128], index: 6, kind: output, shape index: {}]
  %s7 = sld [smem:[#allocation0]]
  $region34: #{net_forward.1} parent=0
    _
  %s9 = ssub.s32 1, %s7
  %s10 = scalar_select 0, %s9, %s7
  $region1: #{net_forward.1} parent=0
    #allocation2 [shape = 'u8[4096]{0}', space=vmem, size = 0x1000, scoped, tag = 'output window, operand 0, single buffered']
    #allocation3 [shape = 's32[1]{0}', space=sflag, size = 0x4, scoped, tag = 'scoped memory for net_forward.1']
    %11 = vsyncpa [#allocation3], 0
    // Predicated region
    $region2: #{net_forward.1} parent=1 // pred_check
      _
    $region3: #{net_forward.1} parent=1 // pred_check_branch
      %13 = sbr.rel (0) target = $region5
    $region4: #{net_forward.1} parent=1 // pred_region
      _
    $region5: #{net_forward.1} parent=1 // pred_fallthru
      _
    // Predicated region
    $region6: #{net_forward.1} parent=1 // pred_check
      _
    $region7: #{net_forward.1} parent=1 // pred_check_branch
      %15 = sbr.rel (0) target = $region9
    $region8: #{net_forward.1} parent=1 // pred_region
      _
    $region9: #{net_forward.1} parent=1 // pred_fallthru
      _
    // Predicated region
    $region10: #{net_forward.1} parent=1 // pred_check
      _
    $region11: #{net_forward.1} parent=1 // pred_check_branch
      %17 = sbr.rel (0) target = $region13
    $region12: #{net_forward.1} parent=1 // pred_region
      _
    $region13: #{net_forward.1} parent=1 // pred_fallthru
      _
    // Predicated region
    $region14: #{net_forward.1} parent=1 // pred_check
      _
    $region15: #{net_forward.1} parent=1 // pred_check_branch
      %19 = sbr.rel (0) target = $region17
    $region16: #{net_forward.1} parent=1 // pred_region
      _
    $region17: #{net_forward.1} parent=1 // pred_fallthru
      _
    // Predicated region
    $region18: #{net_forward.1} parent=1 // pred_check
      _
    $region19: #{net_forward.1} parent=1 // pred_check_branch
      %21 = sbr.rel (0) target = $region21
    $region20: #{net_forward.1} parent=1 // pred_region
      _
    $region21: #{net_forward.1} parent=1 // pred_fallthru
      _
    // Predicated region
    $region22: #{net_forward.1} parent=1 // pred_check
      _
    $region23: #{net_forward.1} parent=1 // pred_check_branch
      %23 = sbr.rel (0) target = $region25
    $region24: #{net_forward.1} parent=1 // pred_region
      _
    $region25: #{net_forward.1} parent=1 // pred_fallthru
      _
    %v24 = vld [vmem:[%s0] sm:$0xff]
    %v25 = vld [vmem:[%s1] sm:$0xff]
    %v26 = vld [vmem:[%s1 + $0x8] sm:$0xff]
    %vm27 = vcmask 130048
    %v29 = vsel %vm27, %v24, 0
    %31 = vmatprep.subr.mxu0 0.0
    %32 = vmatpush1.msra.mxu0 %v25
    %33 = vmatprep.subr.mxu0 0.0
    %34 = vmatpush1.msra.mxu0 %v26
    %35 = vmatprep.subr.mxu0 0.0
    %36 = vmatpush1.msra.mxu0 0.0
    %37 = vmatprep.subr.mxu0 0.0
    %38 = vmatpush1.msra.mxu0 0.0
    %39 = vmatprep.subr.mxu0 0.0
    %40 = vmatpush1.msra.mxu0 0.0
    %41 = vmatprep.subr.mxu0 0.0
    %42 = vmatpush1.msra.mxu0 0.0
    %43 = vmatprep.subr.mxu0 0.0
    %44 = vmatpush1.msra.mxu0 0.0
    %45 = vmatprep.subr.mxu0 0.0
    %46 = vmatpush1.msra.mxu0 0.0
    %47 = vmatprep.subr.mxu0 0.0
    %48 = vmatpush1.msra.mxu0 0.0
    %49 = vmatprep.subr.mxu0 0.0
    %50 = vmatpush1.msra.mxu0 0.0
    %51 = vmatprep.subr.mxu0 0.0
    %52 = vmatpush1.msra.mxu0 0.0
    %53 = vmatprep.subr.mxu0 0.0
    %54 = vmatpush1.msra.mxu0 0.0
    %55 = vmatprep.subr.mxu0 0.0
    %56 = vmatpush1.msra.mxu0 0.0
    %57 = vmatprep.subr.mxu0 0.0
    %58 = vmatpush1.msra.mxu0 0.0
    %59 = vmatprep.subr.mxu0 0.0
    %60 = vmatpush1.msra.mxu0 0.0
    %61 = vmatprep.subr.mxu0 0.0
    %62 = vmatpush1.msra.mxu0 0.0
    %63 = vmatprep.subr.mxu0 0.0
    %64 = vmatpush1.msra.mxu0 0.0
    %65 = vmatprep.subr.mxu0 0.0
    %66 = vmatpush1.msra.mxu0 0.0
    %67 = vmatprep.subr.mxu0 0.0
    %68 = vmatpush1.msra.mxu0 0.0
    %69 = vmatprep.subr.mxu0 0.0
    %70 = vmatpush1.msra.mxu0 0.0
    %71 = vmatprep.subr.mxu0 0.0
    %72 = vmatpush1.msra.mxu0 0.0
    %73 = vmatprep.subr.mxu0 0.0
    %74 = vmatpush1.msra.mxu0 0.0
    %75 = vmatprep.subr.mxu0 0.0
    %76 = vmatpush1.msra.mxu0 0.0
    %77 = vmatprep.subr.mxu0 0.0
    %78 = vmatpush1.msra.mxu0 0.0
    %79 = vmatprep.subr.mxu0 0.0
    %80 = vmatpush1.msra.mxu0 0.0
    %81 = vmatprep.subr.mxu0 0.0
    %82 = vmatpush1.msra.mxu0 0.0
    %83 = vmatprep.subr.mxu0 0.0
    %84 = vmatpush1.msra.mxu0 0.0
    %85 = vmatprep.subr.mxu0 0.0
    %86 = vmatpush1.msra.mxu0 0.0
    %87 = vmatprep.subr.mxu0 0.0
    %88 = vmatpush1.msra.mxu0 0.0
    %89 = vmatprep.subr.mxu0 0.0
    %90 = vmatpush1.msra.mxu0 0.0
    %91 = vmatprep.subr.mxu0 0.0
    %92 = vmatpush1.msra.mxu0 0.0
    %93 = vmatprep.subr.mxu0 0.0
    %94 = vmatpush1.msra.mxu0 0.0
    %95 = vmatprep.mubr.f32.mxu0 0.0
    %96 = vmatmul.mubr.f32.gmra.mrb[0].mxu0 %v29
    %v97 = vpop.f32.mrb[0].mxu0
    %v98 = vadd.f32 0.0, %v97
    %v99 = vpop.f32.mrb[0].mxu0
    %100 = vdwg.mxu0
    %v101 = vld [vmem:[%s4] sm:$0x1]
    %v102 = vld [vmem:[%s4 + $0x1] sm:$0x1]
    %vm103 = vcmask 261120
    %v104 = vsel %vm103, %v98, 0.0
    %v105 = vrot.slane %v104, 4
    %v106 = vadd.f32 %v104, %v105
    %v107 = vrot.slane %v106, 2
    %v108 = vadd.f32 %v106, %v107
    %v109 = vrot.slane %v108, 1
    %v110 = vadd.f32 %v108, %v109
    %v111 = vmul.f32 %v110, 0.125
    %v112 = vmul.f32 %v98, %v98
    %v113 = vsel %vm103, %v112, 0.0
    %v114 = vrot.slane %v113, 4
    %v115 = vadd.f32 %v113, %v114
    %v116 = vrot.slane %v115, 2
    %v117 = vadd.f32 %v115, %v116
    %v118 = vrot.slane %v117, 1
    %v119 = vadd.f32 %v117, %v118
    %v120 = vmul.f32 %v119, 0.125
    %v121 = vmul.f32 %v111, %v111
    %v122 = vsub.f32 %v120, %v121
    %v123 = vadd.f32 %v122, 1e-05
    %v124 = vrsqrt.pop %v123
    %v125 = vmul.f32 %v101, %v124
    %v126 = vmul.f32 %v111, %v125
    %v127 = vsub.f32 %v102, %v126
    %v128 = vlaneseq
    %v129 = vshrl.u32 %v128, 7
    %v130 = vsub.s32 0, %v129
    %v131 = vrot.slane %v125, %v130
    %v132 = vmul.f32 %v98, %v131
    %v133 = vlaneseq
    %v134 = vshrl.u32 %v133, 7
    %v135 = vsub.s32 0, %v134
    %v136 = vrot.slane %v127, %v135
    %v137 = vadd.f32 %v132, %v136
    %v138 = vmax.f32 %v137, 0.0
    %v139 = vld [vmem:[%s2] sm:$0xff]
    %v140 = vld [vmem:[%s2 + $0x8] sm:$0xff]
    %v141 = vld [vmem:[%s2 + $0x10] sm:$0xff]
    %v142 = vld [vmem:[%s2 + $0x18] sm:$0xff]
    %v144 = vsel %vm103, %v138, 0
    %146 = vmatprep.subr.mxu0 0.0
    %147 = vmatpush1.msra.mxu0 %v139
    %148 = vmatprep.subr.mxu0 0.0
    %149 = vmatpush1.msra.mxu0 %v140
    %150 = vmatprep.subr.mxu0 0.0
    %151 = vmatpush1.msra.mxu0 %v141
    %152 = vmatprep.subr.mxu0 0.0
    %153 = vmatpush1.msra.mxu0 %v142
    %154 = vmatprep.subr.mxu0 0.0
    %155 = vmatpush1.msra.mxu0 0.0
    %156 = vmatprep.subr.mxu0 0.0
    %157 = vmatpush1.msra.mxu0 0.0
    %158 = vmatprep.subr.mxu0 0.0
    %159 = vmatpush1.msra.mxu0 0.0
    %160 = vmatprep.subr.mxu0 0.0
    %161 = vmatpush1.msra.mxu0 0.0
    %162 = vmatprep.subr.mxu0 0.0
    %163 = vmatpush1.msra.mxu0 0.0
    %164 = vmatprep.subr.mxu0 0.0
    %165 = vmatpush1.msra.mxu0 0.0
    %166 = vmatprep.subr.mxu0 0.0
    %167 = vmatpush1.msra.mxu0 0.0
    %168 = vmatprep.subr.mxu0 0.0
    %169 = vmatpush1.msra.mxu0 0.0
    %170 = vmatprep.subr.mxu0 0.0
    %171 = vmatpush1.msra.mxu0 0.0
    %172 = vmatprep.subr.mxu0 0.0
    %173 = vmatpush1.msra.mxu0 0.0
    %174 = vmatprep.subr.mxu0 0.0
    %175 = vmatpush1.msra.mxu0 0.0
    %176 = vmatprep.subr.mxu0 0.0
    %177 = vmatpush1.msra.mxu0 0.0
    %178 = vmatprep.subr.mxu0 0.0
    %179 = vmatpush1.msra.mxu0 0.0
    %180 = vmatprep.subr.mxu0 0.0
    %181 = vmatpush1.msra.mxu0 0.0
    %182 = vmatprep.subr.mxu0 0.0
    %183 = vmatpush1.msra.mxu0 0.0
    %184 = vmatprep.subr.mxu0 0.0
    %185 = vmatpush1.msra.mxu0 0.0
    %186 = vmatprep.subr.mxu0 0.0
    %187 = vmatpush1.msra.mxu0 0.0
    %188 = vmatprep.subr.mxu0 0.0
    %189 = vmatpush1.msra.mxu0 0.0
    %190 = vmatprep.subr.mxu0 0.0
    %191 = vmatpush1.msra.mxu0 0.0
    %192 = vmatprep.subr.mxu0 0.0
    %193 = vmatpush1.msra.mxu0 0.0
    %194 = vmatprep.subr.mxu0 0.0
    %195 = vmatpush1.msra.mxu0 0.0
    %196 = vmatprep.subr.mxu0 0.0
    %197 = vmatpush1.msra.mxu0 0.0
    %198 = vmatprep.subr.mxu0 0.0
    %199 = vmatpush1.msra.mxu0 0.0
    %200 = vmatprep.subr.mxu0 0.0
    %201 = vmatpush1.msra.mxu0 0.0
    %202 = vmatprep.subr.mxu0 0.0
    %203 = vmatpush1.msra.mxu0 0.0
    %204 = vmatprep.subr.mxu0 0.0
    %205 = vmatpush1.msra.mxu0 0.0
    %206 = vmatprep.subr.mxu0 0.0
    %207 = vmatpush1.msra.mxu0 0.0
    %208 = vmatprep.subr.mxu0 0.0
    %209 = vmatpush1.msra.mxu0 0.0
    %210 = vmatprep.mubr.f32.mxu0 0.0
    %211 = vmatmul.mubr.f32.gmra.mrb[0].mxu0 %v144
    %v212 = vpop.f32.mrb[0].mxu0
    %v213 = vadd.f32 0.0, %v212
    %v214 = vpop.f32.mrb[0].mxu0
    %215 = vdwg.mxu0
    %v216 = vld [vmem:[%s4 + $0x2] sm:$0x1]
    %v217 = vld [vmem:[%s4 + $0x3] sm:$0x1]
    %v218 = vsel %vm103, %v213, 0.0
    %v219 = vrot.slane %v218, 4
    %v220 = vadd.f32 %v218, %v219
    %v221 = vrot.slane %v220, 2
    %v222 = vadd.f32 %v220, %v221
    %v223 = vrot.slane %v222, 1
    %v224 = vadd.f32 %v222, %v223
    %v225 = vmul.f32 %v224, 0.125
    %v226 = vmul.f32 %v213, %v213
    %v227 = vsel %vm103, %v226, 0.0
    %v228 = vrot.slane %v227, 4
    %v229 = vadd.f32 %v227, %v228
    %v230 = vrot.slane %v229, 2
    %v231 = vadd.f32 %v229, %v230
    %v232 = vrot.slane %v231, 1
    %v233 = vadd.f32 %v231, %v232
    %v234 = vmul.f32 %v233, 0.125
    %v235 = vmul.f32 %v225, %v225
    %v236 = vsub.f32 %v234, %v235
    %v237 = vadd.f32 %v236, 1e-05
    %v238 = vrsqrt.pop %v237
    %v239 = vmul.f32 %v216, %v238
    %v240 = vmul.f32 %v225, %v239
    %v241 = vsub.f32 %v217, %v240
    %v242 = vlaneseq
    %v243 = vshrl.u32 %v242, 7
    %v244 = vsub.s32 0, %v243
    %v245 = vrot.slane %v239, %v244
    %v246 = vmul.f32 %v213, %v245
    %v247 = vlaneseq
    %v248 = vshrl.u32 %v247, 7
    %v249 = vsub.s32 0, %v248
    %v250 = vrot.slane %v241, %v249
    %v251 = vadd.f32 %v246, %v250
    %v252 = vmax.f32 %v251, 0.0
    %v253 = vld [vmem:[%s3] sm:$0xff]
    %v254 = vld [vmem:[%s3 + $0x8] sm:$0xff]
    %v255 = vld [vmem:[%s3 + $0x10] sm:$0xff]
    %v256 = vld [vmem:[%s3 + $0x18] sm:$0xff]
    %v257 = vld [vmem:[%s5] sm:$0x1]
    %v259 = vlaneseq
    %v260 = vshrl.u32 %v259, 7
    %v261 = vsub.s32 0, %v260
    %v262 = vrot.slane %v257, %v261
    %v265 = vsel %vm103, %v252, 0
    %267 = vmatprep.subr.mxu0 0.0
    %268 = vmatpush1.msra.mxu0 %v253
    %269 = vmatprep.subr.mxu0 0.0
    %270 = vmatpush1.msra.mxu0 %v254
    %271 = vmatprep.subr.mxu0 0.0
    %272 = vmatpush1.msra.mxu0 %v255
    %273 = vmatprep.subr.mxu0 0.0
    %274 = vmatpush1.msra.mxu0 %v256
    %275 = vmatprep.subr.mxu0 0.0
    %276 = vmatpush1.msra.mxu0 0.0
    %277 = vmatprep.subr.mxu0 0.0
    %278 = vmatpush1.msra.mxu0 0.0
    %279 = vmatprep.subr.mxu0 0.0
    %280 = vmatpush1.msra.mxu0 0.0
    %281 = vmatprep.subr.mxu0 0.0
    %282 = vmatpush1.msra.mxu0 0.0
    %283 = vmatprep.subr.mxu0 0.0
    %284 = vmatpush1.msra.mxu0 0.0
    %285 = vmatprep.subr.mxu0 0.0
    %286 = vmatpush1.msra.mxu0 0.0
    %287 = vmatprep.subr.mxu0 0.0
    %288 = vmatpush1.msra.mxu0 0.0
    %289 = vmatprep.subr.mxu0 0.0
    %290 = vmatpush1.msra.mxu0 0.0
    %291 = vmatprep.subr.mxu0 0.0
    %292 = vmatpush1.msra.mxu0 0.0
    %293 = vmatprep.subr.mxu0 0.0
    %294 = vmatpush1.msra.mxu0 0.0
    %295 = vmatprep.subr.mxu0 0.0
    %296 = vmatpush1.msra.mxu0 0.0
    %297 = vmatprep.subr.mxu0 0.0
    %298 = vmatpush1.msra.mxu0 0.0
    %299 = vmatprep.subr.mxu0 0.0
    %300 = vmatpush1.msra.mxu0 0.0
    %301 = vmatprep.subr.mxu0 0.0
    %302 = vmatpush1.msra.mxu0 0.0
    %303 = vmatprep.subr.mxu0 0.0
    %304 = vmatpush1.msra.mxu0 0.0
    %305 = vmatprep.subr.mxu0 0.0
    %306 = vmatpush1.msra.mxu0 0.0
    %307 = vmatprep.subr.mxu0 0.0
    %308 = vmatpush1.msra.mxu0 0.0
    %309 = vmatprep.subr.mxu0 0.0
    %310 = vmatpush1.msra.mxu0 0.0
    %311 = vmatprep.subr.mxu0 0.0
    %312 = vmatpush1.msra.mxu0 0.0
    %313 = vmatprep.subr.mxu0 0.0
    %314 = vmatpush1.msra.mxu0 0.0
    %315 = vmatprep.subr.mxu0 0.0
    %316 = vmatpush1.msra.mxu0 0.0
    %317 = vmatprep.subr.mxu0 0.0
    %318 = vmatpush1.msra.mxu0 0.0
    %319 = vmatprep.subr.mxu0 0.0
    %320 = vmatpush1.msra.mxu0 0.0
    %321 = vmatprep.subr.mxu0 0.0
    %322 = vmatpush1.msra.mxu0 0.0
    %323 = vmatprep.subr.mxu0 0.0
    %324 = vmatpush1.msra.mxu0 0.0
    %325 = vmatprep.subr.mxu0 0.0
    %326 = vmatpush1.msra.mxu0 0.0
    %327 = vmatprep.subr.mxu0 0.0
    %328 = vmatpush1.msra.mxu0 0.0
    %329 = vmatprep.subr.mxu0 0.0
    %330 = vmatpush1.msra.mxu0 0.0
    %331 = vmatprep.mubr.f32.mxu0 0.0
    %332 = vmatmul.mubr.f32.gmra.mrb[0].mxu0 %v265
    %v333 = vpop.f32.mrb[0].mxu0
    %v334 = vadd.f32 %v262, %v333
    %v335 = vpop.f32.mrb[0].mxu0
    %336 = vdwg.mxu0
    %v337 = vlaneseq
    %v338 = vand.u32 %v337, 127
    %vm339 = vcmp.lt.s32.totalorder %v338, 8
    %v340 = vsel %vm339, %v334, -1e+30
    %341 = vmax.xlane.f32.xlu0 %v340
    %v342 = vpop.xlane.xlu0 %341
    %v343 = vsub.f32 %v340, %v342
    %v344 = vmul.f32 %v343, 1.442695
    %v345 = vpow.pop %v344
    %346 = vadd.xlane.f32.xlu0 %v345
    %v347 = vpop.xlane.xlu0 %346
    %v348 = vlog2.pop %v347
    %v349 = vmul.f32 %v348, 0.6931472
    %v350 = vadd.f32 %v342, %v349
    %v351 = vsub.f32 %v334, %v350
    %352 = vst [vmem:[#allocation2] sm:$0xff] %v351
    // Predicated region
    $region26: #{net_forward.1} parent=1 // pred_check
      _
    $region27: #{net_forward.1} parent=1 // pred_check_branch
      %354 = sbr.rel (0) target = $region29
    $region28: #{net_forward.1} parent=1 // pred_region
      %s356 = ssub.s32 128, 128
      %357 = vsyncadd [#allocation3], %s356
      %s359 = sshll.u32 [#allocation2], 4
      %s360 = int_to_ptr.vmem [resolvable:$true] %s359
      %362 = dma.vmem_to_hbm [thread:$0]  %s360, 128, %s6, [#allocation3]
    $region29: #{net_forward.1} parent=1 // pred_fallthru
      _
    // Predicated region
    $region30: #{net_forward.1} parent=1 // pred_check
      _
    $region31: #{net_forward.1} parent=1 // pred_check_branch
      %364 = sbr.rel (0) target = $region33
    $region32: #{net_forward.1} parent=1 // pred_region
      %365 = dma.done [#allocation3], 128
    $region33: #{net_forward.1} parent=1 // pred_fallthru
      _
    %366 = vsyncpa [#allocation3], 1

</llo_original>
